<compile_context>
chip_gen: v7x
topology: tpu7x:2x2x1
jax: 0.10.0
libtpu: 0.0.40
codegen_flags: <defaults>
</compile_context>

<pallas_src>
import functools

import jax
import jax.numpy as jnp
from jax.experimental import pallas as pl
from jax.experimental.pallas import tpu as pltpu


def _round_up(x, m):
    return ((x + m - 1) // m) * m


# --------------------------------------------------------------------------- #
# Kernels
# --------------------------------------------------------------------------- #
def _gate_kernel(inst_ref, glob_ref, w1a_ref, w1b_ref, b1_ref, w2_ref, b2_ref,
                 out_ref):
    """cat([x, g], 1) @ W1.T + b1 -> LeakyReLU(0.01) -> @ w2.T + b2 (lane-packed)."""
    # Cast MXU operands to the weight dtype inside the kernel (VPU op, no HBM
    # traffic); a no-op when the activations already match.
    x = inst_ref[...].astype(w1a_ref.dtype)
    g = glob_ref[...].astype(w1b_ref.dtype)
    # Linear(2F -> F) with the dim=1 concat fused as a split contraction (f32 acc).
    h = (jnp.dot(x, w1a_ref[...], preferred_element_type=jnp.float32)
         + jnp.dot(g, w1b_ref[...], preferred_element_type=jnp.float32)
         + b1_ref[...])                                     # (tile_p, pack*F)
    # LeakyReLU (PyTorch default negative_slope = 0.01), f32 on the VPU.
    h = jnp.where(h > 0, h, jnp.float32(0.01) * h)
    # Linear(F -> 1): contract the packed (pack, pack*F) w2 against h on the
    # feature axis so the result is already a lane-dense (pack, tile_p) slab
    # (wide unmasked stores); the wrapper transposes back (moves only N*4 B).
    out = jax.lax.dot_general(
        w2_ref[...], h, dimension_numbers=(((1,), (1,)), ((), ())),
        preferred_element_type=jnp.float32) + b2_ref[...]
    out_ref[...] = out.astype(out_ref.dtype)


def _gate_fused_kernel(inst_ref, w1a_ref, fb_ref, w2_ref, b2_ref, out_ref):
    """Variant with global_feature folded into the bias (per-bag broadcast)."""
    x = inst_ref[...].astype(w1a_ref.dtype)
    h = jnp.dot(x, w1a_ref[...], preferred_element_type=jnp.float32) + fb_ref[...]
    h = jnp.where(h > 0, h, jnp.float32(0.01) * h)
    out = jax.lax.dot_general(
        w2_ref[...], h, dimension_numbers=(((1,), (1,)), ((), ())),
        preferred_element_type=jnp.float32) + b2_ref[...]
    out_ref[...] = out.astype(out_ref.dtype)


# --------------------------------------------------------------------------- #
# One-time parameter preparation (transposes, concat split, lane packing)
# --------------------------------------------------------------------------- #
def _default_packs(feat_dim):
    p = 1
    while p * 2 * feat_dim <= 128 and p * 2 <= 8:
        p *= 2
    packs = []
    while p >= 1:
        packs.append(p)
        p //= 2
    return tuple(packs)


def prepare_params(params, feat_dim, compute_dtype=jnp.float32, packs=None):
    """Build {pack: weights}. kron(I_pack, W) block-diagonal weights let the
    wrapper reshape (N, F) -> (N/pack, pack*F) for free (row-major) so the
    activations are lane-dense (up to 128 lanes) in VMEM and on the MXU."""
    if packs is None:
        packs = _default_packs(feat_dim)
    packs = tuple(sorted(set(packs) | {1}, reverse=True))
    w1_t = jnp.asarray(params["w1"], jnp.float32).T          # (2F, F), W stored (out, in)
    w1a, w1b = w1_t[:feat_dim], w1_t[feat_dim:]              # x-part, g-part
    b1 = jnp.asarray(params["b1"], jnp.float32).reshape(1, feat_dim)
    w2 = jnp.asarray(params["w2"], jnp.float32).reshape(1, feat_dim)
    b2 = jnp.asarray(params["b2"], jnp.float32).reshape(1, 1)
    out = {}
    for p in packs:
        eye = jnp.eye(p, dtype=jnp.float32)
        out[p] = {
            "w1a": jnp.kron(eye, w1a).astype(compute_dtype),  # (pF, pF)
            "w1b": jnp.kron(eye, w1b).astype(compute_dtype),  # (pF, pF)
            "b1": jnp.tile(b1, (1, p)),                       # (1, pF)
            "w2": jnp.kron(eye, w2),                          # (p, pF)
            "b2": b2,                                         # (1, 1)
        }
    return out


def prepare_fused_params(params, feat_dim, global_vec, compute_dtype=jnp.float32,
                         packs=None):
    """Fast path: valid only when every row of global_feature equals `global_vec`
    (the usual per-bag broadcast in MIL).  Folds global_vec @ W1b + b1 into a
    bias so the kernel streams only instance_feature."""
    if packs is None:
        packs = _default_packs(feat_dim)
    packs = tuple(sorted(set(packs) | {1}, reverse=True))
    w1_t = jnp.asarray(params["w1"], jnp.float32).T
    w1a, w1b = w1_t[:feat_dim], w1_t[feat_dim:]
    gb = (jnp.asarray(global_vec, jnp.float32).reshape(1, feat_dim) @ w1b
          + jnp.asarray(params["b1"], jnp.float32).reshape(1, feat_dim))
    w2 = jnp.asarray(params["w2"], jnp.float32).reshape(1, feat_dim)
    b2 = jnp.asarray(params["b2"], jnp.float32).reshape(1, 1)
    out = {}
    for p in packs:
        eye = jnp.eye(p, dtype=jnp.float32)
        out[p] = {
            "w1a": jnp.kron(eye, w1a).astype(compute_dtype),
            "fused_b1": jnp.tile(gb, (1, p)),
            "w2": jnp.kron(eye, w2),
            "b2": b2,
        }
    return out


# --------------------------------------------------------------------------- #
# Wrappers
# --------------------------------------------------------------------------- #
def _choose_tiling(n_packed, width, itemsize, tile_rows, pack, num_streams):
    """Pick the packed-row tile: as large as possible (amortize the ~0.35us/step
    grid overhead on this HBM-bound kernel) while keeping the double-buffered
    activation streams under ~20 MiB so everything fits a 32 MiB scoped-VMEM
    limit on v5e/v6e/v7x."""
    lanes = _round_up(width, 128)                  # VMEM lane padding
    act_budget = 20 << 20
    per_row = lanes * itemsize
    max_p = max(128, (act_budget // (num_streams * 2 * per_row)) // 128 * 128)
    limit_p = max(128, (max(tile_rows, 1) // pack) // 128 * 128)
    limit_p = min(limit_p, max_p)
    if n_packed <= limit_p:
        return n_packed, 1                         # single full-extent block
    return limit_p, pl.cdiv(n_packed, limit_p)     # ragged tail masked by Pallas


@functools.partial(jax.jit, static_argnames=("tile_rows",))
def instance_attention_gate(instance_feature, global_feature, prepared,
                            *, tile_rows=16384):
    """instance_feature, global_feature: (N, F). Returns (N, 1) attention logits."""
    n, feat_dim = instance_feature.shape
    out_dtype = instance_feature.dtype
    # Largest prepared pack that divides N (pack=1 always available).
    pack = max(p for p in prepared if n % p == 0)
    pp = prepared[pack]
    width = pack * feat_dim
    n_packed = n // pack
    # Free reshapes: (N, F) row-major bytes are exactly (N/pack, pack*F).
    inst = instance_feature.reshape(n_packed, width)
    glob = global_feature.reshape(n_packed, width)

    itemsize = jnp.dtype(instance_feature.dtype).itemsize
    tile_p, num_tiles = _choose_tiling(n_packed, width, itemsize, tile_rows,
                                       pack, num_streams=2)

    flops = 4 * n * feat_dim * feat_dim + 2 * n * feat_dim
    bytes_accessed = (2 * n * feat_dim * itemsize
                      + n * jnp.dtype(out_dtype).itemsize
                      + 2 * width * width * jnp.dtype(pp["w1a"].dtype).itemsize)

    act_spec = pl.BlockSpec((tile_p, width), lambda i: (i, 0))
    const = lambda s: pl.BlockSpec(s, lambda i: (0, 0))   # resident across grid

    out = pl.pallas_call(
        _gate_kernel,
        out_shape=jax.ShapeDtypeStruct((pack, n_packed), out_dtype),
        grid=(num_tiles,),
        in_specs=[
            act_spec,                              # instance_feature tile
            act_spec,                              # global_feature tile
            const((width, width)),                 # kron(I_pack, W1a)
            const((width, width)),                 # kron(I_pack, W1b)
            const((1, width)),                     # packed b1
            const((pack, width)),                  # kron(I_pack, w2)
            const((1, 1)),                         # b2
        ],
        out_specs=pl.BlockSpec((pack, tile_p), lambda i: (0, i)),   # lane-dense
        compiler_params=pltpu.CompilerParams(
            dimension_semantics=("parallel",),     # v7x: 2 TCs split the grid
            vmem_limit_bytes=32 << 20),            # safe on v5e/v6e/v7x
        cost_estimate=pl.CostEstimate(flops=flops, transcendentals=0,
                                      bytes_accessed=bytes_accessed),
    )(inst, glob, pp["w1a"], pp["w1b"], pp["b1"], pp["w2"], pp["b2"])

    # (pack, n_packed) lane-dense slab back to the module's (N, 1) column
    # layout; the transpose moves only N * itemsize bytes (~1.5% of input traffic).
    return out.T.reshape(n, 1)


@functools.partial(jax.jit, static_argnames=("tile_rows",))
def instance_attention_gate_fused_global(instance_feature, prepared_fused,
                                         *, tile_rows=16384):
    """Fast path: global_feature is a single per-bag vector already folded into
    the bias by prepare_fused_params(); streams only instance_feature."""
    n, feat_dim = instance_feature.shape
    out_dtype = instance_feature.dtype
    pack = max(p for p in prepared_fused if n % p == 0)
    pp = prepared_fused[pack]
    width = pack * feat_dim
    n_packed = n // pack
    inst = instance_feature.reshape(n_packed, width)

    itemsize = jnp.dtype(instance_feature.dtype).itemsize
    tile_p, num_tiles = _choose_tiling(n_packed, width, itemsize, tile_rows,
                                       pack, num_streams=1)

    flops = 2 * n * feat_dim * feat_dim + 2 * n * feat_dim
    bytes_accessed = (n * feat_dim * itemsize + n * jnp.dtype(out_dtype).itemsize
                      + width * width * jnp.dtype(pp["w1a"].dtype).itemsize)

    act_spec = pl.BlockSpec((tile_p, width), lambda i: (i, 0))
    const = lambda s: pl.BlockSpec(s, lambda i: (0, 0))

    out = pl.pallas_call(
        _gate_fused_kernel,
        out_shape=jax.ShapeDtypeStruct((pack, n_packed), out_dtype),
        grid=(num_tiles,),
        in_specs=[
            act_spec,
            const((width, width)),                 # kron(I_pack, W1a)
            const((1, width)),                     # fused bias (g @ W1b + b1)
            const((pack, width)),                  # kron(I_pack, w2)
            const((1, 1)),                         # b2
        ],
        out_specs=pl.BlockSpec((pack, tile_p), lambda i: (0, i)),
        compiler_params=pltpu.CompilerParams(
            dimension_semantics=("parallel",),
            vmem_limit_bytes=32 << 20),
        cost_estimate=pl.CostEstimate(flops=flops, transcendentals=0,
                                      bytes_accessed=bytes_accessed),
    )(inst, pp["w1a"], pp["fused_b1"], pp["w2"], pp["b2"])
    return out.T.reshape(n, 1)


# --------------------------------------------------------------------------- #
# Reference / init / demo
# --------------------------------------------------------------------------- #
def init_params(key, feat_dim):
    k1, k2, k3, k4 = jax.random.split(key, 4)
    # nn.Linear shapes: W (out, in), b (out,)
    w1 = jax.random.normal(k1, (feat_dim, 2 * feat_dim), jnp.float32) * 0.05
    b1 = jax.random.normal(k2, (feat_dim,), jnp.float32) * 0.05
    w2 = jax.random.normal(k3, (1, feat_dim), jnp.float32) * 0.05
    b2 = jax.random.normal(k4, (1,), jnp.float32) * 0.05
    return {"w1": w1, "b1": b1, "w2": w2, "b2": b2}


def reference(instance_feature, global_feature, params):
    feat = jnp.concatenate([instance_feature, global_feature], axis=1)
    h = feat @ params["w1"].T + params["b1"]
    h = jnp.where(h > 0, h, 0.01 * h)
    return h @ params["w2"].T + params["b2"]


if __name__ == "__main__":
    FEAT_DIM = 32
    key = jax.random.PRNGKey(0)
    k_inst, k_glob, k_params = jax.random.split(key, 3)
    params = init_params(k_params, FEAT_DIM)
    prepared = prepare_params(params, FEAT_DIM)              # f32 weights

    # --- base case: small N (pack=4 -> 128-lane dense), single grid step ----
    N = 8
    inst = jax.random.normal(k_inst, (N, FEAT_DIM), jnp.float32)
    glob = jax.random.normal(k_glob, (N, FEAT_DIM), jnp.float32)
    ref = reference(inst, glob, params)
    out = jax.block_until_ready(instance_attention_gate(inst, glob, prepared))
    assert out.shape == (N, 1)
    assert jnp.allclose(out, ref, atol=1e-5, rtol=1e-5), "f32 kernel mismatch"

    # --- N not a multiple of 4 -> smaller pack, no padding copy -------------
    N2 = 6
    inst2, glob2 = inst[:N2], glob[:N2]
    out2 = jax.block_until_ready(instance_attention_gate(inst2, glob2, prepared))
    assert jnp.allclose(out2, reference(inst2, glob2, params),
                        atol=1e-5, rtol=1e-5), "pack-fallback mismatch"

    # --- multi-tile grid with a ragged (masked) tail block ------------------
    N3 = 520
    k3a, k3b = jax.random.split(jax.random.PRNGKey(1))
    inst3 = jax.random.normal(k3a, (N3, FEAT_DIM), jnp.float32)
    glob3 = jax.random.normal(k3b, (N3, FEAT_DIM), jnp.float32)
    out3 = jax.block_until_ready(
        instance_attention_gate(inst3, glob3, prepared, tile_rows=512))
    assert jnp.allclose(out3, reference(inst3, glob3, params),
                        atol=1e-5, rtol=1e-5), "ragged-grid mismatch"

    # --- bf16 activations already in HBM (no wrapper convert pass) ----------
    prepared_bf16 = prepare_params(params, FEAT_DIM, compute_dtype=jnp.bfloat16)
    inst_bf, glob_bf = inst.astype(jnp.bfloat16), glob.astype(jnp.bfloat16)
    out_bf = jax.block_until_ready(
        instance_attention_gate(inst_bf, glob_bf, prepared_bf16))
    assert jnp.allclose(out_bf.astype(jnp.float32), ref,
                        atol=3e-2, rtol=3e-2), "bf16 kernel mismatch"

    # --- fused-global fast path (global_feature broadcast per bag) ----------
    gvec = glob[0]
    glob_b = jnp.broadcast_to(gvec, (N, FEAT_DIM))
    prepared_fused = prepare_fused_params(params, FEAT_DIM, gvec)
    out_f = jax.block_until_ready(
        instance_attention_gate_fused_global(inst, prepared_fused))
    assert jnp.allclose(out_f, reference(inst, glob_b, params),
                        atol=1e-5, rtol=1e-5), "fused-global mismatch"

    print("KERNEL_OK")
</pallas_src>

<mosaic_0001>
module attributes {stable_mosaic.version = 11 : i64} {
  func.func @_gate_kernel(%arg0: i32, %arg1: memref<2x128xf32, #tpu.memory_space<vmem>>, %arg2: memref<2x128xf32, #tpu.memory_space<vmem>>, %arg3: memref<128x128xf32, #tpu.memory_space<vmem>>, %arg4: memref<128x128xf32, #tpu.memory_space<vmem>>, %arg5: memref<1x128xf32, #tpu.memory_space<vmem>>, %arg6: memref<4x128xf32, #tpu.memory_space<vmem>>, %arg7: memref<1x1xf32, #tpu.memory_space<vmem>>, %arg8: memref<4x2xf32, #tpu.memory_space<vmem>>) attributes {dimension_semantics = [#tpu.dimension_semantics<parallel>], iteration_bounds = array<i64: 1>, scalar_prefetch = 0 : i64, scratch_operands = 0 : i64, tpu.core_type = #tpu.core_type<tc>, window_params = [{transform_indices = @transform_0, window_bounds = array<i64: 2, 128>}, {transform_indices = @transform_1, window_bounds = array<i64: 2, 128>}, {pipeline_mode = #tpu.pipeline_mode<synchronous>, transform_indices = @transform_2, window_bounds = array<i64: 128, 128>}, {pipeline_mode = #tpu.pipeline_mode<synchronous>, transform_indices = @transform_3, window_bounds = array<i64: 128, 128>}, {pipeline_mode = #tpu.pipeline_mode<synchronous>, transform_indices = @transform_4, window_bounds = array<i64: 1, 128>}, {pipeline_mode = #tpu.pipeline_mode<synchronous>, transform_indices = @transform_5, window_bounds = array<i64: 4, 128>}, {pipeline_mode = #tpu.pipeline_mode<synchronous>, transform_indices = @transform_6, window_bounds = array<i64: 1, 1>}, {transform_indices = @transform_7, window_bounds = array<i64: 4, 2>}]} {
    %c0 = arith.constant 0 : index
    %c0_0 = arith.constant 0 : index
    %0 = vector.load %arg1[%c0, %c0_0] : memref<2x128xf32, #tpu.memory_space<vmem>>, vector<2x128xf32>
    %c0_1 = arith.constant 0 : index
    %c0_2 = arith.constant 0 : index
    %1 = vector.load %arg2[%c0_1, %c0_2] : memref<2x128xf32, #tpu.memory_space<vmem>>, vector<2x128xf32>
    %c0_3 = arith.constant 0 : index
    %c0_4 = arith.constant 0 : index
    %2 = vector.load %arg3[%c0_3, %c0_4] : memref<128x128xf32, #tpu.memory_space<vmem>>, vector<128x128xf32>
    %cst = arith.constant dense<0.000000e+00> : vector<2x128xf32>
    %3 = tpu.matmul %0, %2, %cst {dimension_numbers = #tpu.dot_dimension_numbers<[1], [0], [0], [1], [0, 0, 1, 1], [], []>} : vector<2x128xf32>, vector<128x128xf32>, vector<2x128xf32> -> vector<2x128xf32>
    %c0_5 = arith.constant 0 : index
    %c0_6 = arith.constant 0 : index
    %4 = vector.load %arg4[%c0_5, %c0_6] : memref<128x128xf32, #tpu.memory_space<vmem>>, vector<128x128xf32>
    %cst_7 = arith.constant dense<0.000000e+00> : vector<2x128xf32>
    %5 = tpu.matmul %1, %4, %cst_7 {dimension_numbers = #tpu.dot_dimension_numbers<[1], [0], [0], [1], [0, 0, 1, 1], [], []>} : vector<2x128xf32>, vector<128x128xf32>, vector<2x128xf32> -> vector<2x128xf32>
    %6 = arith.addf %3, %5 : vector<2x128xf32>
    %c0_8 = arith.constant 0 : index
    %c0_9 = arith.constant 0 : index
    %7 = vector.load %arg5[%c0_8, %c0_9] : memref<1x128xf32, #tpu.memory_space<vmem>>, vector<1x128xf32>
    %8 = vector.broadcast %7 : vector<1x128xf32> to vector<2x128xf32>
    %9 = arith.addf %6, %8 : vector<2x128xf32>
    %cst_10 = arith.constant 0.000000e+00 : f32
    %10 = vector.broadcast %cst_10 : f32 to vector<2x128xf32>
    %11 = arith.cmpf ogt, %9, %10 : vector<2x128xf32>
    %cst_11 = arith.constant 0.00999999977 : f32
    %12 = vector.broadcast %cst_11 : f32 to vector<2x128xf32>
    %13 = arith.mulf %12, %9 : vector<2x128xf32>
    %14 = arith.select %11, %9, %13 : vector<2x128xi1>, vector<2x128xf32>
    %c0_12 = arith.constant 0 : index
    %c0_13 = arith.constant 0 : index
    %15 = vector.load %arg6[%c0_12, %c0_13] : memref<4x128xf32, #tpu.memory_space<vmem>>, vector<4x128xf32>
    %cst_14 = arith.constant dense<0.000000e+00> : vector<4x2xf32>
    %16 = tpu.matmul %15, %14, %cst_14 {dimension_numbers = #tpu.dot_dimension_numbers<[1], [1], [0], [0], [0, 0, 1, 0], [], []>} : vector<4x128xf32>, vector<2x128xf32>, vector<4x2xf32> -> vector<4x2xf32>
    %c0_15 = arith.constant 0 : index
    %c0_16 = arith.constant 0 : index
    %17 = vector.load %arg7[%c0_15, %c0_16] : memref<1x1xf32, #tpu.memory_space<vmem>>, vector<1x1xf32>
    %18 = vector.broadcast %17 : vector<1x1xf32> to vector<4x2xf32>
    %19 = arith.addf %16, %18 : vector<4x2xf32>
    %c0_17 = arith.constant 0 : index
    %c0_18 = arith.constant 0 : index
    %20 = vector.load %arg8[%c0_17, %c0_18] : memref<4x2xf32, #tpu.memory_space<vmem>>, vector<4x2xf32>
    tpu.vector_store %arg8[%c0_17, %c0_18], %19 {strides = array<i32>} : memref<4x2xf32, #tpu.memory_space<vmem>>, vector<4x2xf32>,
    return
  }
  func.func @transform_0(%arg0: i32) -> (i32, i32) {
    %c0_i32 = arith.constant 0 : i32
    %c0_i32_0 = arith.constant 0 : i32
    return %arg0, %c0_i32 : i32, i32
  }
  func.func @transform_1(%arg0: i32) -> (i32, i32) {
    %c0_i32 = arith.constant 0 : i32
    %c0_i32_0 = arith.constant 0 : i32
    return %arg0, %c0_i32 : i32, i32
  }
  func.func @transform_2(%arg0: i32) -> (i32, i32) {
    %c0_i32 = arith.constant 0 : i32
    %c0_i32_0 = arith.constant 0 : i32
    %c0_i32_1 = arith.constant 0 : i32
    return %c0_i32, %c0_i32_0 : i32, i32
  }
  func.func @transform_3(%arg0: i32) -> (i32, i32) {
    %c0_i32 = arith.constant 0 : i32
    %c0_i32_0 = arith.constant 0 : i32
    %c0_i32_1 = arith.constant 0 : i32
    return %c0_i32, %c0_i32_0 : i32, i32
  }
  func.func @transform_4(%arg0: i32) -> (i32, i32) {
    %c0_i32 = arith.constant 0 : i32
    %c0_i32_0 = arith.constant 0 : i32
    %c0_i32_1 = arith.constant 0 : i32
    return %c0_i32, %c0_i32_0 : i32, i32
  }
  func.func @transform_5(%arg0: i32) -> (i32, i32) {
    %c0_i32 = arith.constant 0 : i32
    %c0_i32_0 = arith.constant 0 : i32
    %c0_i32_1 = arith.constant 0 : i32
    return %c0_i32, %c0_i32_0 : i32, i32
  }
  func.func @transform_6(%arg0: i32) -> (i32, i32) {
    %c0_i32 = arith.constant 0 : i32
    %c0_i32_0 = arith.constant 0 : i32
    %c0_i32_1 = arith.constant 0 : i32
    return %c0_i32, %c0_i32_0 : i32, i32
  }
  func.func @transform_7(%arg0: i32) -> (i32, i32) {
    %c0_i32 = arith.constant 0 : i32
    %c0_i32_0 = arith.constant 0 : i32
    return %c0_i32, %arg0 : i32, i32
  }
}

</mosaic_0001>

<llo_original>
// kernel: instance_attention_gate.1
$region0: #{instance_attention_gate.1}
  #allocation0 [shape = 'u32[]', space=smem, size = 0x4, offset = 0x4, fixed_abs, tag = 'smem constant byte address 0x4 - core index']
  #allocation1 [shape = 'u32[144,128]{1,0:T(1,128)}', space=vmem, size = 0x12000, scoped, tag = 'internal scratch']
  #allocation2 [shape = 'f32[1,1]{1,0:T(1,128)S(1)}', space=vmem, size = 0x200, scoped, tag = 'scoped memory for instance_attention_gate.1']
  %s0 = inlined_call_operand.vmem [shape: f32[2,128], index: 0, kind: input, shape index: {}]
  %s1 = inlined_call_operand.vmem [shape: f32[2,128], index: 1, kind: input, shape index: {}]
  %s2 = inlined_call_operand.hbm [shape: f32[128,128], index: 2, kind: input, shape index: {}]
  %s3 = inlined_call_operand.hbm [shape: f32[128,128], index: 3, kind: input, shape index: {}]
  %s4 = inlined_call_operand.vmem [shape: f32[1,128], index: 4, kind: input, shape index: {}]
  %s5 = inlined_call_operand.vmem [shape: f32[4,128], index: 5, kind: input, shape index: {}]
  %s6 = inlined_call_operand.<no memory space> [shape: f32[1,1], index: 6, kind: input, shape index: {}]
  %s7 = inlined_call_operand.vmem [shape: f32[4,2], index: 7, kind: output, shape index: {}]
  %s8 = sld [smem:[#allocation0]]
  $region46: #{instance_attention_gate.1} parent=0
    _
  %s10 = ssub.s32 1, %s8
  %s11 = scalar_select 0, %s10, %s8
  %v12 = vstv %s6
  %13 = vst [vmem:[#allocation2] sm:$0x1] %v12
  $region1: #{instance_attention_gate.1} parent=0
    #allocation3 [shape = 'u8[65536]{0}', space=vmem, size = 0x10000, scoped, tag = 'input window, operand 2, single buffered']
    #allocation4 [shape = 's32[1]{0}', space=sflag, size = 0x4, scoped, tag = 'scoped memory for instance_attention_gate.1']
    #allocation5 [shape = 'u8[65536]{0}', space=vmem, size = 0x10000, scoped, tag = 'input window, operand 3, single buffered']
    #allocation6 [shape = 's32[1]{0}', space=sflag, size = 0x4, scoped, tag = 'scoped memory for instance_attention_gate.1']
    %14 = vsyncpa [#allocation4], 0
    %15 = vsyncpa [#allocation6], 0
    // Predicated region
    $region2: #{instance_attention_gate.1} parent=1 // pred_check
      _
    $region3: #{instance_attention_gate.1} parent=1 // pred_check_branch
      %17 = sbr.rel (0) target = $region5
    $region4: #{instance_attention_gate.1} parent=1 // pred_region
      _
    $region5: #{instance_attention_gate.1} parent=1 // pred_fallthru
      _
    // Predicated region
    $region6: #{instance_attention_gate.1} parent=1 // pred_check
      _
    $region7: #{instance_attention_gate.1} parent=1 // pred_check_branch
      %19 = sbr.rel (0) target = $region9
    $region8: #{instance_attention_gate.1} parent=1 // pred_region
      _
    $region9: #{instance_attention_gate.1} parent=1 // pred_fallthru
      _
    // Predicated region
    $region10: #{instance_attention_gate.1} parent=1 // pred_check
      _
    $region11: #{instance_attention_gate.1} parent=1 // pred_check_branch
      %21 = sbr.rel (0) target = $region13
    $region12: #{instance_attention_gate.1} parent=1 // pred_region
      %s23 = ssub.s32 2048, 2048
      %24 = vsyncadd [#allocation4], %s23
      %s25 = sshll.u32 [#allocation3], 4
      %s26 = int_to_ptr.vmem [resolvable:$true] %s25
      %31 = dma.hbm_to_vmem [thread:$0]  %s2, 2048, %s26, [#allocation4], 128, 128, 8
    $region13: #{instance_attention_gate.1} parent=1 // pred_fallthru
      _
    // Predicated region
    $region14: #{instance_attention_gate.1} parent=1 // pred_check
      _
    $region15: #{instance_attention_gate.1} parent=1 // pred_check_branch
      %33 = sbr.rel (0) target = $region17
    $region16: #{instance_attention_gate.1} parent=1 // pred_region
      %s35 = ssub.s32 2048, 2048
      %36 = vsyncadd [#allocation6], %s35
      %s37 = sshll.u32 [#allocation5], 4
      %s38 = int_to_ptr.vmem [resolvable:$true] %s37
      %43 = dma.hbm_to_vmem [thread:$0]  %s3, 2048, %s38, [#allocation6], 128, 128, 8
    $region17: #{instance_attention_gate.1} parent=1 // pred_fallthru
      _
    // Predicated region
    $region18: #{instance_attention_gate.1} parent=1 // pred_check
      _
    $region19: #{instance_attention_gate.1} parent=1 // pred_check_branch
      %45 = sbr.rel (0) target = $region21
    $region20: #{instance_attention_gate.1} parent=1 // pred_region
      _
    $region21: #{instance_attention_gate.1} parent=1 // pred_fallthru
      _
    // Predicated region
    $region22: #{instance_attention_gate.1} parent=1 // pred_check
      _
    $region23: #{instance_attention_gate.1} parent=1 // pred_check_branch
      %47 = sbr.rel (0) target = $region25
    $region24: #{instance_attention_gate.1} parent=1 // pred_region
      _
    $region25: #{instance_attention_gate.1} parent=1 // pred_fallthru
      _
    // Predicated region
    $region26: #{instance_attention_gate.1} parent=1 // pred_check
      _
    $region27: #{instance_attention_gate.1} parent=1 // pred_check_branch
      %49 = sbr.rel (0) target = $region29
    $region28: #{instance_attention_gate.1} parent=1 // pred_region
      _
    $region29: #{instance_attention_gate.1} parent=1 // pred_fallthru
      _
    // Predicated region
    $region30: #{instance_attention_gate.1} parent=1 // pred_check
      _
    $region31: #{instance_attention_gate.1} parent=1 // pred_check_branch
      %51 = sbr.rel (0) target = $region33
    $region32: #{instance_attention_gate.1} parent=1 // pred_region
      %52 = dma.done [#allocation4], 2048
    $region33: #{instance_attention_gate.1} parent=1 // pred_fallthru
      _
    // Predicated region
    $region34: #{instance_attention_gate.1} parent=1 // pred_check
      _
    $region35: #{instance_attention_gate.1} parent=1 // pred_check_branch
      %54 = sbr.rel (0) target = $region37
    $region36: #{instance_attention_gate.1} parent=1 // pred_region
      %55 = dma.done [#allocation6], 2048
    $region37: #{instance_attention_gate.1} parent=1 // pred_fallthru
      _
    %v56 = vld [vmem:[%s0] sm:$0x3]
    %v57 = vld [vmem:[%s1] sm:$0x3]
    %v58 = vld [vmem:[#allocation3] sm:$0xff]
    %v59 = vld [vmem:[#allocation3 + $0x8] sm:$0xff]
    %v60 = vld [vmem:[#allocation3 + $0x10] sm:$0xff]
    %v61 = vld [vmem:[#allocation3 + $0x18] sm:$0xff]
    %v62 = vld [vmem:[#allocation3 + $0x20] sm:$0xff]
    %v63 = vld [vmem:[#allocation3 + $0x28] sm:$0xff]
    %v64 = vld [vmem:[#allocation3 + $0x30] sm:$0xff]
    %v65 = vld [vmem:[#allocation3 + $0x38] sm:$0xff]
    %v66 = vld [vmem:[#allocation3 + $0x40] sm:$0xff]
    %v67 = vld [vmem:[#allocation3 + $0x48] sm:$0xff]
    %v68 = vld [vmem:[#allocation3 + $0x50] sm:$0xff]
    %v69 = vld [vmem:[#allocation3 + $0x58] sm:$0xff]
    %v70 = vld [vmem:[#allocation3 + $0x60] sm:$0xff]
    %v71 = vld [vmem:[#allocation3 + $0x68] sm:$0xff]
    %v72 = vld [vmem:[#allocation3 + $0x70] sm:$0xff]
    %v73 = vld [vmem:[#allocation3 + $0x78] sm:$0xff]
    %v74 = vld [vmem:[#allocation5] sm:$0xff]
    %v75 = vld [vmem:[#allocation5 + $0x8] sm:$0xff]
    %v76 = vld [vmem:[#allocation5 + $0x10] sm:$0xff]
    %v77 = vld [vmem:[#allocation5 + $0x18] sm:$0xff]
    %v78 = vld [vmem:[#allocation5 + $0x20] sm:$0xff]
    %v79 = vld [vmem:[#allocation5 + $0x28] sm:$0xff]
    %v80 = vld [vmem:[#allocation5 + $0x30] sm:$0xff]
    %v81 = vld [vmem:[#allocation5 + $0x38] sm:$0xff]
    %v82 = vld [vmem:[#allocation5 + $0x40] sm:$0xff]
    %v83 = vld [vmem:[#allocation5 + $0x48] sm:$0xff]
    %v84 = vld [vmem:[#allocation5 + $0x50] sm:$0xff]
    %v85 = vld [vmem:[#allocation5 + $0x58] sm:$0xff]
    %v86 = vld [vmem:[#allocation5 + $0x60] sm:$0xff]
    %v87 = vld [vmem:[#allocation5 + $0x68] sm:$0xff]
    %v88 = vld [vmem:[#allocation5 + $0x70] sm:$0xff]
    %v89 = vld [vmem:[#allocation5 + $0x78] sm:$0xff]
    %90 = vmatprep.subr.mxu0 0.0
    %91 = vmatpush1.msra.mxu0 %v74
    %92 = vmatprep.subr.mxu0 0.0
    %93 = vmatpush1.msra.mxu0 %v75
    %94 = vmatprep.subr.mxu0 0.0
    %95 = vmatpush1.msra.mxu0 %v76
    %96 = vmatprep.subr.mxu0 0.0
    %97 = vmatpush1.msra.mxu0 %v77
    %98 = vmatprep.subr.mxu0 0.0
    %99 = vmatpush1.msra.mxu0 %v78
    %100 = vmatprep.subr.mxu0 0.0
    %101 = vmatpush1.msra.mxu0 %v79
    %102 = vmatprep.subr.mxu0 0.0
    %103 = vmatpush1.msra.mxu0 %v80
    %104 = vmatprep.subr.mxu0 0.0
    %105 = vmatpush1.msra.mxu0 %v81
    %106 = vmatprep.subr.mxu0 0.0
    %107 = vmatpush1.msra.mxu0 %v82
    %108 = vmatprep.subr.mxu0 0.0
    %109 = vmatpush1.msra.mxu0 %v83
    %110 = vmatprep.subr.mxu0 0.0
    %111 = vmatpush1.msra.mxu0 %v84
    %112 = vmatprep.subr.mxu0 0.0
    %113 = vmatpush1.msra.mxu0 %v85
    %114 = vmatprep.subr.mxu0 0.0
    %115 = vmatpush1.msra.mxu0 %v86
    %116 = vmatprep.subr.mxu0 0.0
    %117 = vmatpush1.msra.mxu0 %v87
    %118 = vmatprep.subr.mxu0 0.0
    %119 = vmatpush1.msra.mxu0 %v88
    %120 = vmatprep.subr.mxu0 0.0
    %121 = vmatpush1.msra.mxu0 %v89
    %122 = vmatprep.subr.mxu0 0.0
    %123 = vmatpush1.msra.mxu0 0.0
    %124 = vmatprep.subr.mxu0 0.0
    %125 = vmatpush1.msra.mxu0 0.0
    %126 = vmatprep.subr.mxu0 0.0
    %127 = vmatpush1.msra.mxu0 0.0
    %128 = vmatprep.subr.mxu0 0.0
    %129 = vmatpush1.msra.mxu0 0.0
    %130 = vmatprep.subr.mxu0 0.0
    %131 = vmatpush1.msra.mxu0 0.0
    %132 = vmatprep.subr.mxu0 0.0
    %133 = vmatpush1.msra.mxu0 0.0
    %134 = vmatprep.subr.mxu0 0.0
    %135 = vmatpush1.msra.mxu0 0.0
    %136 = vmatprep.subr.mxu0 0.0
    %137 = vmatpush1.msra.mxu0 0.0
    %138 = vmatprep.subr.mxu0 0.0
    %139 = vmatpush1.msra.mxu0 0.0
    %140 = vmatprep.subr.mxu0 0.0
    %141 = vmatpush1.msra.mxu0 0.0
    %142 = vmatprep.subr.mxu0 0.0
    %143 = vmatpush1.msra.mxu0 0.0
    %144 = vmatprep.subr.mxu0 0.0
    %145 = vmatpush1.msra.mxu0 0.0
    %146 = vmatprep.subr.mxu0 0.0
    %147 = vmatpush1.msra.mxu0 0.0
    %148 = vmatprep.subr.mxu0 0.0
    %149 = vmatpush1.msra.mxu0 0.0
    %150 = vmatprep.subr.mxu0 0.0
    %151 = vmatpush1.msra.mxu0 0.0
    %152 = vmatprep.subr.mxu0 0.0
    %153 = vmatpush1.msra.mxu0 0.0
    %154 = vmatprep.mubr.f32.mxu0 0.0
    %155 = vmatmul.mubr.f32.gmra.mrb[0].mxu0 %v57
    %v156 = vpop.f32.mrb[0].mxu0
    %v157 = vadd.f32 0.0, %v156
    %v158 = vpop.f32.mrb[0].mxu0
    %159 = vdwg.mxu0
    %160 = vmatprep.subr.mxu0 0.0
    %161 = vmatpush1.msra.mxu0 %v58
    %162 = vmatprep.subr.mxu0 0.0
    %163 = vmatpush1.msra.mxu0 %v59
    %164 = vmatprep.subr.mxu0 0.0
    %165 = vmatpush1.msra.mxu0 %v60
    %166 = vmatprep.subr.mxu0 0.0
    %167 = vmatpush1.msra.mxu0 %v61
    %168 = vmatprep.subr.mxu0 0.0
    %169 = vmatpush1.msra.mxu0 %v62
    %170 = vmatprep.subr.mxu0 0.0
    %171 = vmatpush1.msra.mxu0 %v63
    %172 = vmatprep.subr.mxu0 0.0
    %173 = vmatpush1.msra.mxu0 %v64
    %174 = vmatprep.subr.mxu0 0.0
    %175 = vmatpush1.msra.mxu0 %v65
    %176 = vmatprep.subr.mxu0 0.0
    %177 = vmatpush1.msra.mxu0 %v66
    %178 = vmatprep.subr.mxu0 0.0
    %179 = vmatpush1.msra.mxu0 %v67
    %180 = vmatprep.subr.mxu0 0.0
    %181 = vmatpush1.msra.mxu0 %v68
    %182 = vmatprep.subr.mxu0 0.0
    %183 = vmatpush1.msra.mxu0 %v69
    %184 = vmatprep.subr.mxu0 0.0
    %185 = vmatpush1.msra.mxu0 %v70
    %186 = vmatprep.subr.mxu0 0.0
    %187 = vmatpush1.msra.mxu0 %v71
    %188 = vmatprep.subr.mxu0 0.0
    %189 = vmatpush1.msra.mxu0 %v72
    %190 = vmatprep.subr.mxu0 0.0
    %191 = vmatpush1.msra.mxu0 %v73
    %192 = vmatprep.subr.mxu0 0.0
    %193 = vmatpush1.msra.mxu0 0.0
    %194 = vmatprep.subr.mxu0 0.0
    %195 = vmatpush1.msra.mxu0 0.0
    %196 = vmatprep.subr.mxu0 0.0
    %197 = vmatpush1.msra.mxu0 0.0
    %198 = vmatprep.subr.mxu0 0.0
    %199 = vmatpush1.msra.mxu0 0.0
    %200 = vmatprep.subr.mxu0 0.0
    %201 = vmatpush1.msra.mxu0 0.0
    %202 = vmatprep.subr.mxu0 0.0
    %203 = vmatpush1.msra.mxu0 0.0
    %204 = vmatprep.subr.mxu0 0.0
    %205 = vmatpush1.msra.mxu0 0.0
    %206 = vmatprep.subr.mxu0 0.0
    %207 = vmatpush1.msra.mxu0 0.0
    %208 = vmatprep.subr.mxu0 0.0
    %209 = vmatpush1.msra.mxu0 0.0
    %210 = vmatprep.subr.mxu0 0.0
    %211 = vmatpush1.msra.mxu0 0.0
    %212 = vmatprep.subr.mxu0 0.0
    %213 = vmatpush1.msra.mxu0 0.0
    %214 = vmatprep.subr.mxu0 0.0
    %215 = vmatpush1.msra.mxu0 0.0
    %216 = vmatprep.subr.mxu0 0.0
    %217 = vmatpush1.msra.mxu0 0.0
    %218 = vmatprep.subr.mxu0 0.0
    %219 = vmatpush1.msra.mxu0 0.0
    %220 = vmatprep.subr.mxu0 0.0
    %221 = vmatpush1.msra.mxu0 0.0
    %222 = vmatprep.subr.mxu0 0.0
    %223 = vmatpush1.msra.mxu0 0.0
    %224 = vmatprep.mubr.f32.mxu0 0.0
    %225 = vmatmul.mubr.f32.gmra.mrb[0].mxu0 %v56
    %v226 = vpop.f32.mrb[0].mxu0
    %v227 = vadd.f32 %v157, %v226
    %v228 = vpop.f32.mrb[0].mxu0
    %229 = vdwg.mxu0
    %v230 = vld [vmem:[%s4] sm:$0x1]
    %v232 = vlaneseq
    %v233 = vshrl.u32 %v232, 7
    %v234 = vsub.s32 0, %v233
    %v235 = vrot.slane %v230, %v234
    %v237 = vadd.f32 %v227, %v235
    %vm238 = vcmp.gt.f32.partialorder %v237, 0.0
    %v239 = vmul.f32 %v237, 0.01
    %v240 = vsel %vm238, %v237, %v239
    %v241 = vld [vmem:[%s5] sm:$0xf]
    %v242 = vld [vmem:[#allocation2] sm:$0x1]
    %v244 = vlaneseq
    %v245 = vshrl.u32 %v244, 7
    %v246 = vsub.s32 0, %v245
    %v247 = vrot.slane %v242, %v246
    %248 = vset.pattern.permute.xlu0 0
    %249 = vperm.xlu0 %248, %v247
    %v250 = vpop.permute.xlu0 %249
    %252 = vmatprep.subr.mxu0 0.0
    %253 = vmatpush1.xpose.msra.mxu0 %v240
    %254 = vmatprep.subr.mxu0 0.0
    %255 = vmatpush1.xpose.msra.mxu0 0.0
    %256 = vmatprep.subr.mxu0 0.0
    %257 = vmatpush1.xpose.msra.mxu0 0.0
    %258 = vmatprep.subr.mxu0 0.0
    %259 = vmatpush1.xpose.msra.mxu0 0.0
    %260 = vmatprep.subr.mxu0 0.0
    %261 = vmatpush1.xpose.msra.mxu0 0.0
    %262 = vmatprep.subr.mxu0 0.0
    %263 = vmatpush1.xpose.msra.mxu0 0.0
    %264 = vmatprep.subr.mxu0 0.0
    %265 = vmatpush1.xpose.msra.mxu0 0.0
    %266 = vmatprep.subr.mxu0 0.0
    %267 = vmatpush1.xpose.msra.mxu0 0.0
    %268 = vmatprep.subr.mxu0 0.0
    %269 = vmatpush1.xpose.msra.mxu0 0.0
    %270 = vmatprep.subr.mxu0 0.0
    %271 = vmatpush1.xpose.msra.mxu0 0.0
    %272 = vmatprep.subr.mxu0 0.0
    %273 = vmatpush1.xpose.msra.mxu0 0.0
    %274 = vmatprep.subr.mxu0 0.0
    %275 = vmatpush1.xpose.msra.mxu0 0.0
    %276 = vmatprep.subr.mxu0 0.0
    %277 = vmatpush1.xpose.msra.mxu0 0.0
    %278 = vmatprep.subr.mxu0 0.0
    %279 = vmatpush1.xpose.msra.mxu0 0.0
    %280 = vmatprep.subr.mxu0 0.0
    %281 = vmatpush1.xpose.msra.mxu0 0.0
    %282 = vmatprep.subr.mxu0 0.0
    %283 = vmatpush1.xpose.msra.mxu0 0.0
    %284 = vmatprep.subr.mxu0 0.0
    %285 = vmatpush1.xpose.msra.mxu0 0.0
    %286 = vmatprep.subr.mxu0 0.0
    %287 = vmatpush1.xpose.msra.mxu0 0.0
    %288 = vmatprep.subr.mxu0 0.0
    %289 = vmatpush1.xpose.msra.mxu0 0.0
    %290 = vmatprep.subr.mxu0 0.0
    %291 = vmatpush1.xpose.msra.mxu0 0.0
    %292 = vmatprep.subr.mxu0 0.0
    %293 = vmatpush1.xpose.msra.mxu0 0.0
    %294 = vmatprep.subr.mxu0 0.0
    %295 = vmatpush1.xpose.msra.mxu0 0.0
    %296 = vmatprep.subr.mxu0 0.0
    %297 = vmatpush1.xpose.msra.mxu0 0.0
    %298 = vmatprep.subr.mxu0 0.0
    %299 = vmatpush1.xpose.msra.mxu0 0.0
    %300 = vmatprep.subr.mxu0 0.0
    %301 = vmatpush1.xpose.msra.mxu0 0.0
    %302 = vmatprep.subr.mxu0 0.0
    %303 = vmatpush1.xpose.msra.mxu0 0.0
    %304 = vmatprep.subr.mxu0 0.0
    %305 = vmatpush1.xpose.msra.mxu0 0.0
    %306 = vmatprep.subr.mxu0 0.0
    %307 = vmatpush1.xpose.msra.mxu0 0.0
    %308 = vmatprep.subr.mxu0 0.0
    %309 = vmatpush1.xpose.msra.mxu0 0.0
    %310 = vmatprep.subr.mxu0 0.0
    %311 = vmatpush1.xpose.msra.mxu0 0.0
    %312 = vmatprep.subr.mxu0 0.0
    %313 = vmatpush1.xpose.msra.mxu0 0.0
    %314 = vmatprep.subr.mxu0 0.0
    %315 = vmatpush1.xpose.msra.mxu0 0.0
    %316 = vmatprep.mubr.f32.mxu0 0.0
    %317 = vmatmul.mubr.f32.gmra.mrb[0].mxu0 %v241
    %v318 = vpop.f32.mrb[0].mxu0
    %v319 = vadd.f32 %v250, %v318
    %v320 = vpop.f32.mrb[0].mxu0
    %321 = vdwg.mxu0
    %vm322 = vcmask 11264
    %323 = vst.msk [vmem:[%s7] sm:$0xf] %vm322, %v319
    // Predicated region
    $region38: #{instance_attention_gate.1} parent=1 // pred_check
      _
    $region39: #{instance_attention_gate.1} parent=1 // pred_check_branch
      %325 = sbr.rel (0) target = $region41
    $region40: #{instance_attention_gate.1} parent=1 // pred_region
      _
    $region41: #{instance_attention_gate.1} parent=1 // pred_fallthru
      _
    // Predicated region
    $region42: #{instance_attention_gate.1} parent=1 // pred_check
      _
    $region43: #{instance_attention_gate.1} parent=1 // pred_check_branch
      %327 = sbr.rel (0) target = $region45
    $region44: #{instance_attention_gate.1} parent=1 // pred_region
      _
    $region45: #{instance_attention_gate.1} parent=1 // pred_fallthru
      _
    %328 = vsyncpa [#allocation4], 1
    %329 = vsyncpa [#allocation6], 1

</llo_original>
